<compile_context>
chip_gen: v5e
topology: v5e:2x2
jax: 0.10.0
libtpu: 0.0.40
codegen_flags: <defaults>
</compile_context>

<pallas_src>
import functools

import jax
import jax.numpy as jnp
from jax.experimental import pallas as pl
from jax.experimental.pallas import tpu as pltpu


def _tpu_hw():
    """Best-effort (vmem_capacity_bytes, num_tensorcores) with safe fallbacks."""
    vmem_cap = 64 * 1024 * 1024      # v7x per-core VMEM: safe lower bound
    num_cores = 1
    try:
        info = pltpu.get_tpu_info()
        v = getattr(info, "vmem_capacity_bytes", None)
        if isinstance(v, int) and v > 0:
            vmem_cap = v
        for name in ("num_cores", "core_count", "num_tensorcores",
                     "tensorcores_per_chip"):
            c = getattr(info, name, None)
            if isinstance(c, int) and c > 0:
                num_cores = c
                break
    except Exception:
        pass
    return vmem_cap, num_cores


def _reward_criterion_kernel(inp_ref, seq_ref, rew_ref, num_ref, den_ref,
                             num_acc, den_acc, *, b_total, tb, steps_per_core,
                             need_row_mask, vreg_acc):
    i = pl.program_id(1)

    @pl.when(i == 0)
    def _init():
        num_acc[...] = jnp.zeros_like(num_acc)
        den_acc[...] = jnp.zeros_like(den_acc)

    inp = inp_ref[...].astype(jnp.float32)
    rew = rew_ref[...].astype(jnp.float32)
    seq = seq_ref[...]

    # mask[:, t] = (seq[:, t-1] > 0) for t >= 1 and 1.0 at t == 0.
    seq_mask = (seq > 0).astype(jnp.float32)
    shifted = pltpu.roll(seq_mask, shift=1, axis=1)   # XLU; col-0 wrap overridden
    col = jax.lax.broadcasted_iota(jnp.int32, seq_mask.shape, 1)
    mask = jnp.where(col == 0, jnp.float32(1.0), shifted)

    num_tile = -inp * rew * mask
    den_tile = mask

    if need_row_mask:
        # Partial / phantom row blocks: mask the *products* (OOB rows hold
        # unspecified data; NaN * 0 would poison the accumulator).
        blk = pl.program_id(0) * steps_per_core + i
        row = jax.lax.broadcasted_iota(jnp.int32, seq_mask.shape, 0) + blk * tb
        valid = row < b_total
        num_tile = jnp.where(valid, num_tile, jnp.float32(0.0))
        den_tile = jnp.where(valid, den_tile, jnp.float32(0.0))

    if vreg_acc:
        # Fold row-tiles with pure VPU vreg adds into an (8, T) accumulator;
        # no per-step cross-lane/sublane XLU reduce on the critical path.
        r, t = num_tile.shape
        num_acc[...] += num_tile.reshape(r // 8, 8, t).sum(axis=0)
        den_acc[...] += den_tile.reshape(r // 8, 8, t).sum(axis=0)
    else:
        num_acc[...] += jnp.sum(num_tile, keepdims=True)
        den_acc[...] += jnp.sum(den_tile, keepdims=True)

    @pl.when(i == pl.num_programs(1) - 1)
    def _finalize():
        num_ref[...] = jnp.sum(num_acc[...]).reshape(1, 1, 1)
        den_ref[...] = jnp.sum(den_acc[...]).reshape(1, 1, 1)


def reward_criterion(inp, seq, reward, *, block_rows=None, split_cores=None):
    """Pallas implementation of RewardCriterion.forward. Returns a scalar f32."""
    assert inp.shape == seq.shape == reward.shape and inp.ndim == 2
    B, T = inp.shape

    vmem_cap, num_cores = _tpu_hw()
    # 3 inputs x 2 pipeline buffers must stay at/under ~half of VMEM.
    per_input_budget = min(8 << 20, vmem_cap // 12)
    row_cap = block_rows if block_rows is not None else max(
        8, per_input_budget // (4 * T))
    if row_cap >= B:
        TB = B                            # one block over all rows (full dim)
    else:
        TB = max(8, (row_cap // 8) * 8)   # multiple-of-8 row tiles; last partial
    # TODO(synk): for extreme T (8 rows x T x 4B x 6 buffers > VMEM) a T-tiled
    # variant carrying the previous block's last seq column is still needed.

    num_blocks = -(-B // TB)
    # Split the batch across TensorCores when there is enough work.  When the
    # core count is unknown, only split if it cannot cost a single-core chip
    # anything (even block count) or the phantom-block waste is negligible.
    if split_cores is not None:
        nc = split_cores if num_blocks >= 2 else 1
    elif num_blocks >= 2 and (num_cores >= 2 or num_blocks % 2 == 0
                              or num_blocks >= 8):
        nc = 2
    else:
        nc = 1
    steps = -(-num_blocks // nc)
    need_row_mask = (nc * steps * TB != B)
    vreg_acc = (TB % 8 == 0)
    clamp = nc * steps > num_blocks

    def in_index(c, i):
        b = c * steps + i
        if clamp:
            b = jnp.minimum(b, num_blocks - 1)   # phantom blocks re-read last
        return (b, 0)

    kernel = functools.partial(
        _reward_criterion_kernel, b_total=B, tb=TB, steps_per_core=steps,
        need_row_mask=need_row_mask, vreg_acc=vreg_acc)

    acc_shape = (8, T) if vreg_acc else (1, 1)
    tile_bytes = TB * T * 4
    working = 6 * tile_bytes + 2 * 4 * acc_shape[0] * acc_shape[1] + (4 << 20)
    vmem_limit = int(min(max(working, 32 << 20), (vmem_cap * 9) // 10))

    num_p, den_p = pl.pallas_call(
        kernel,
        out_shape=(jax.ShapeDtypeStruct((nc, 1, 1), jnp.float32),
                   jax.ShapeDtypeStruct((nc, 1, 1), jnp.float32)),
        grid=(nc, steps),
        in_specs=[
            pl.BlockSpec((TB, T), in_index),
            pl.BlockSpec((TB, T), in_index),
            pl.BlockSpec((TB, T), in_index),
        ],
        out_specs=(pl.BlockSpec((1, 1, 1), lambda c, i: (c, 0, 0)),
                   pl.BlockSpec((1, 1, 1), lambda c, i: (c, 0, 0))),
        scratch_shapes=[
            pltpu.VMEM(acc_shape, jnp.float32),   # running numerator partials
            pltpu.VMEM(acc_shape, jnp.float32),   # running denominator partials
        ],
        compiler_params=pltpu.CompilerParams(
            dimension_semantics=("parallel", "arbitrary"),
            vmem_limit_bytes=vmem_limit),
    )(inp, seq, reward)

    # Tiny cross-core combine + the final divide (scalar work, negligible).
    return jnp.sum(num_p) / jnp.sum(den_p)


def reward_criterion_ref(inp, seq, reward):
    """Pure-JAX reference mirroring the PyTorch forward exactly."""
    mask = (seq > 0).astype(jnp.float32)
    mask = jnp.concatenate(
        [jnp.ones((mask.shape[0], 1), jnp.float32), mask[:, :-1]], axis=1)
    out = -inp * reward * mask
    return jnp.sum(out) / jnp.sum(mask)


if __name__ == "__main__":
    def make_inputs(key, B, T):
        k1, k2, k3 = jax.random.split(key, 3)
        inp = -jnp.abs(jax.random.normal(k1, (B, T), dtype=jnp.float32))
        seq = jax.random.randint(k2, (B, T), minval=0, maxval=5, dtype=jnp.int32)
        reward = jax.random.normal(k3, (B, T), dtype=jnp.float32)
        return inp, seq, reward

    key = jax.random.PRNGKey(0)
    # (shape, forced row-block, forced core split):
    #   (2, 8)            module-spec tiny shape; single full-array block, T<128
    #   (16, 256)         vreg-aligned; (8, T) VPU accumulator path
    #   (24, 128, 8, 2)   multi-block: 2-way core split, row mask, phantom clamp
    cases = [((2, 8), None, None), ((16, 256), None, None), ((24, 128), 8, 2)]
    for (B, T), br, sc in cases:
        key, sub = jax.random.split(key)
        inp, seq, reward = make_inputs(sub, B, T)
        out = jax.block_until_ready(
            reward_criterion(inp, seq, reward, block_rows=br, split_cores=sc))
        ref = reward_criterion_ref(inp, seq, reward)
        assert jnp.allclose(out, ref, rtol=1e-5, atol=1e-6), ((B, T), out, ref)

    print("KERNEL_OK")
</pallas_src>

<mosaic_0001>
module attributes {stable_mosaic.version = 11 : i64} {
  func.func @_reward_criterion_kernel(%arg0: i32, %arg1: i32, %arg2: memref<2x8xf32, #tpu.memory_space<vmem>>, %arg3: memref<2x8xi32, #tpu.memory_space<vmem>>, %arg4: memref<2x8xf32, #tpu.memory_space<vmem>>, %arg5: memref<1x1x1xf32, #tpu.memory_space<vmem>>, %arg6: memref<1x1x1xf32, #tpu.memory_space<vmem>>, %arg7: memref<1x1xf32, #tpu.memory_space<vmem>>, %arg8: memref<1x1xf32, #tpu.memory_space<vmem>>) attributes {dimension_semantics = [#tpu.dimension_semantics<parallel>, #tpu.dimension_semantics<arbitrary>], iteration_bounds = array<i64: 1, 1>, scalar_prefetch = 0 : i64, scratch_operands = 2 : i64, tpu.core_type = #tpu.core_type<tc>, window_params = [{transform_indices = @transform_0, window_bounds = array<i64: 2, 8>}, {transform_indices = @transform_1, window_bounds = array<i64: 2, 8>}, {transform_indices = @transform_2, window_bounds = array<i64: 2, 8>}, {transform_indices = @transform_3, window_bounds = array<i64: 1, 1, 1>}, {transform_indices = @transform_4, window_bounds = array<i64: 1, 1, 1>}]} {
    %c0_i32 = arith.constant 0 : i32
    %0 = arith.cmpi eq, %arg1, %c0_i32 : i32
    %1 = arith.extui %0 : i1 to i32
    %c0_i32_0 = arith.constant 0 : i32
    %2 = arith.cmpi ne, %1, %c0_i32_0 : i32
    scf.if %2 {
      %cst_21 = arith.constant 0.000000e+00 : f32
      %39 = vector.broadcast %cst_21 : f32 to vector<1x1xf32>
      %c0_22 = arith.constant 0 : index
      %c0_23 = arith.constant 0 : index
      %40 = vector.load %arg7[%c0_22, %c0_23] : memref<1x1xf32, #tpu.memory_space<vmem>>, vector<1x1xf32>
      tpu.vector_store %arg7[%c0_22, %c0_23], %39 {strides = array<i32>} : memref<1x1xf32, #tpu.memory_space<vmem>>, vector<1x1xf32>,
      %cst_24 = arith.constant 0.000000e+00 : f32
      %41 = vector.broadcast %cst_24 : f32 to vector<1x1xf32>
      %c0_25 = arith.constant 0 : index
      %c0_26 = arith.constant 0 : index
      %42 = vector.load %arg8[%c0_25, %c0_26] : memref<1x1xf32, #tpu.memory_space<vmem>>, vector<1x1xf32>
      tpu.vector_store %arg8[%c0_25, %c0_26], %41 {strides = array<i32>} : memref<1x1xf32, #tpu.memory_space<vmem>>, vector<1x1xf32>,
    } else {
    }
    %c0 = arith.constant 0 : index
    %c0_1 = arith.constant 0 : index
    %3 = vector.load %arg2[%c0, %c0_1] : memref<2x8xf32, #tpu.memory_space<vmem>>, vector<2x8xf32>
    %c0_2 = arith.constant 0 : index
    %c0_3 = arith.constant 0 : index
    %4 = vector.load %arg4[%c0_2, %c0_3] : memref<2x8xf32, #tpu.memory_space<vmem>>, vector<2x8xf32>
    %c0_4 = arith.constant 0 : index
    %c0_5 = arith.constant 0 : index
    %5 = vector.load %arg3[%c0_4, %c0_5] : memref<2x8xi32, #tpu.memory_space<vmem>>, vector<2x8xi32>
    %c0_i32_6 = arith.constant 0 : i32
    %6 = vector.broadcast %c0_i32_6 : i32 to vector<2x8xi32>
    %7 = arith.cmpi sgt, %5, %6 : vector<2x8xi32>
    %8 = arith.extui %7 : vector<2x8xi1> to vector<2x8xi32>
    %9 = arith.sitofp %8 : vector<2x8xi32> to vector<2x8xf32>
    %c1_i32 = arith.constant 1 : i32
    %10 = tpu.dynamic_rotate %9 by %c1_i32 dim 1 : vector<2x8xf32>, i32 -> vector<2x8xf32>
    %11 = tpu.iota {dimensions = array<i32: 1>} : vector<2x8xi32>
    %c0_i32_7 = arith.constant 0 : i32
    %12 = vector.broadcast %c0_i32_7 : i32 to vector<2x8xi32>
    %13 = arith.cmpi eq, %11, %12 : vector<2x8xi32>
    %cst = arith.constant 1.000000e+00 : f32
    %14 = vector.broadcast %cst : f32 to vector<2x8xf32>
    %15 = arith.select %13, %14, %10 : vector<2x8xi1>, vector<2x8xf32>
    %cst_8 = arith.constant 0.000000e+00 : f32
    %16 = vector.broadcast %cst_8 : f32 to vector<2x8xf32>
    %17 = arith.subf %16, %3 : vector<2x8xf32>
    %18 = arith.mulf %17, %4 : vector<2x8xf32>
    %19 = arith.mulf %18, %15 : vector<2x8xf32>
    %c0_9 = arith.constant 0 : index
    %c0_10 = arith.constant 0 : index
    %20 = vector.load %arg7[%c0_9, %c0_10] : memref<1x1xf32, #tpu.memory_space<vmem>>, vector<1x1xf32>
    %21 = vector.shape_cast %19 : vector<2x8xf32> to vector<1x2x8xf32>
    %cst_11 = arith.constant dense<0.000000e+00> : vector<1xf32>
    %22 = vector.multi_reduction <add>, %21, %cst_11 [1, 2] : vector<1x2x8xf32> to vector<1xf32>
    %23 = vector.shape_cast %22 : vector<1xf32> to vector<1x1x1xf32>
    %24 = vector.extract %23[0, 0, 0] : f32 from vector<1x1x1xf32>
    %25 = vector.broadcast %24 : f32 to vector<1x1xf32>
    %26 = arith.addf %20, %25 : vector<1x1xf32>
    %c0_12 = arith.constant 0 : index
    %c0_13 = arith.constant 0 : index
    %27 = vector.load %arg7[%c0_12, %c0_13] : memref<1x1xf32, #tpu.memory_space<vmem>>, vector<1x1xf32>
    tpu.vector_store %arg7[%c0_12, %c0_13], %26 {strides = array<i32>} : memref<1x1xf32, #tpu.memory_space<vmem>>, vector<1x1xf32>,
    %c0_14 = arith.constant 0 : index
    %c0_15 = arith.constant 0 : index
    %28 = vector.load %arg8[%c0_14, %c0_15] : memref<1x1xf32, #tpu.memory_space<vmem>>, vector<1x1xf32>
    %29 = vector.shape_cast %15 : vector<2x8xf32> to vector<1x2x8xf32>
    %cst_16 = arith.constant dense<0.000000e+00> : vector<1xf32>
    %30 = vector.multi_reduction <add>, %29, %cst_16 [1, 2] : vector<1x2x8xf32> to vector<1xf32>
    %31 = vector.shape_cast %30 : vector<1xf32> to vector<1x1x1xf32>
    %32 = vector.extract %31[0, 0, 0] : f32 from vector<1x1x1xf32>
    %33 = vector.broadcast %32 : f32 to vector<1x1xf32>
    %34 = arith.addf %28, %33 : vector<1x1xf32>
    %c0_17 = arith.constant 0 : index
    %c0_18 = arith.constant 0 : index
    %35 = vector.load %arg8[%c0_17, %c0_18] : memref<1x1xf32, #tpu.memory_space<vmem>>, vector<1x1xf32>
    tpu.vector_store %arg8[%c0_17, %c0_18], %34 {strides = array<i32>} : memref<1x1xf32, #tpu.memory_space<vmem>>, vector<1x1xf32>,
    %c0_i32_19 = arith.constant 0 : i32
    %36 = arith.cmpi eq, %arg1, %c0_i32_19 : i32
    %37 = arith.extui %36 : i1 to i32
    %c0_i32_20 = arith.constant 0 : i32
    %38 = arith.cmpi ne, %37, %c0_i32_20 : i32
    scf.if %38 {
      %c0_21 = arith.constant 0 : index
      %c0_22 = arith.constant 0 : index
      %39 = vector.load %arg7[%c0_21, %c0_22] : memref<1x1xf32, #tpu.memory_space<vmem>>, vector<1x1xf32>
      %40 = vector.shape_cast %39 : vector<1x1xf32> to vector<1x1x1xf32>
      %cst_23 = arith.constant dense<0.000000e+00> : vector<1xf32>
      %41 = vector.multi_reduction <add>, %40, %cst_23 [1, 2] : vector<1x1x1xf32> to vector<1xf32>
      %42 = vector.shape_cast %41 : vector<1xf32> to vector<1x1x1xf32>
      %43 = vector.extract %42[0, 0, 0] : f32 from vector<1x1x1xf32>
      %44 = vector.broadcast %43 : f32 to vector<1x1x1xf32>
      %c0_24 = arith.constant 0 : index
      %c0_25 = arith.constant 0 : index
      %c0_26 = arith.constant 0 : index
      %45 = vector.load %arg5[%c0_24, %c0_25, %c0_26] : memref<1x1x1xf32, #tpu.memory_space<vmem>>, vector<1x1x1xf32>
      tpu.vector_store %arg5[%c0_24, %c0_25, %c0_26], %44 {strides = array<i32>} : memref<1x1x1xf32, #tpu.memory_space<vmem>>, vector<1x1x1xf32>,
      %c0_27 = arith.constant 0 : index
      %c0_28 = arith.constant 0 : index
      %46 = vector.load %arg8[%c0_27, %c0_28] : memref<1x1xf32, #tpu.memory_space<vmem>>, vector<1x1xf32>
      %47 = vector.shape_cast %46 : vector<1x1xf32> to vector<1x1x1xf32>
      %cst_29 = arith.constant dense<0.000000e+00> : vector<1xf32>
      %48 = vector.multi_reduction <add>, %47, %cst_29 [1, 2] : vector<1x1x1xf32> to vector<1xf32>
      %49 = vector.shape_cast %48 : vector<1xf32> to vector<1x1x1xf32>
      %50 = vector.extract %49[0, 0, 0] : f32 from vector<1x1x1xf32>
      %51 = vector.broadcast %50 : f32 to vector<1x1x1xf32>
      %c0_30 = arith.constant 0 : index
      %c0_31 = arith.constant 0 : index
      %c0_32 = arith.constant 0 : index
      %52 = vector.load %arg6[%c0_30, %c0_31, %c0_32] : memref<1x1x1xf32, #tpu.memory_space<vmem>>, vector<1x1x1xf32>
      tpu.vector_store %arg6[%c0_30, %c0_31, %c0_32], %51 {strides = array<i32>} : memref<1x1x1xf32, #tpu.memory_space<vmem>>, vector<1x1x1xf32>,
    } else {
    }
    return
  }
  func.func @transform_0(%arg0: i32, %arg1: i32) -> (i32, i32) {
    %c1_i32 = arith.constant 1 : i32
    %0 = arith.muli %arg0, %c1_i32 : i32
    %1 = arith.addi %0, %arg1 : i32
    %c0_i32 = arith.constant 0 : i32
    %c0_i32_0 = arith.constant 0 : i32
    return %1, %c0_i32 : i32, i32
  }
  func.func @transform_1(%arg0: i32, %arg1: i32) -> (i32, i32) {
    %c1_i32 = arith.constant 1 : i32
    %0 = arith.muli %arg0, %c1_i32 : i32
    %1 = arith.addi %0, %arg1 : i32
    %c0_i32 = arith.constant 0 : i32
    %c0_i32_0 = arith.constant 0 : i32
    return %1, %c0_i32 : i32, i32
  }
  func.func @transform_2(%arg0: i32, %arg1: i32) -> (i32, i32) {
    %c1_i32 = arith.constant 1 : i32
    %0 = arith.muli %arg0, %c1_i32 : i32
    %1 = arith.addi %0, %arg1 : i32
    %c0_i32 = arith.constant 0 : i32
    %c0_i32_0 = arith.constant 0 : i32
    return %1, %c0_i32 : i32, i32
  }
  func.func @transform_3(%arg0: i32, %arg1: i32) -> (i32, i32, i32) {
    %c0_i32 = arith.constant 0 : i32
    %c0_i32_0 = arith.constant 0 : i32
    %c0_i32_1 = arith.constant 0 : i32
    return %arg0, %c0_i32, %c0_i32_0 : i32, i32, i32
  }
  func.func @transform_4(%arg0: i32, %arg1: i32) -> (i32, i32, i32) {
    %c0_i32 = arith.constant 0 : i32
    %c0_i32_0 = arith.constant 0 : i32
    %c0_i32_1 = arith.constant 0 : i32
    return %arg0, %c0_i32, %c0_i32_0 : i32, i32, i32
  }
}

</mosaic_0001>

<llo_original>
// kernel: tpu_custom_call.1
$region0: #{tpu_custom_call.1}
  #allocation0 [shape = 'u32[]', space=smem, size = 0x4, offset = 0x4, fixed_abs, tag = 'smem constant byte address 0x4 - core index']
  #allocation1 [shape = 'u32[72,128]{1,0:T(1,128)}', space=vmem, size = 0x9000, scoped, tag = 'internal scratch']
  #allocation2 [shape = 'f32[1,1]{1,0:T(1,128)}', space=vmem, size = 0x200, scoped, tag = 'scratch operand']
  #allocation3 [shape = 'f32[1,1]{1,0:T(1,128)}', space=vmem, size = 0x200, scoped, tag = 'scratch operand']
  %s0 = inlined_call_operand.hbm [shape: f32[2,8], index: 0, kind: input, shape index: {}]
  %s1 = inlined_call_operand.hbm [shape: s32[2,8], index: 1, kind: input, shape index: {}]
  %s2 = inlined_call_operand.hbm [shape: f32[2,8], index: 2, kind: input, shape index: {}]
  %s3 = inlined_call_operand.hbm [shape: f32[1,1,1], index: 3, kind: output, shape index: {0}]
  %s4 = inlined_call_operand.hbm [shape: f32[1,1,1], index: 4, kind: output, shape index: {1}]
  %5 = xla_tuple %s3, %s4
  %s6 = sld [smem:[#allocation0]]
  $region50: #{tpu_custom_call.1} parent=0
    _
  %s8 = ssub.s32 1, %s6
  %s9 = scalar_select 0, %s8, %s6
  $region1: #{tpu_custom_call.1} parent=0
    #allocation4 [shape = 'u8[1024]{0}', space=vmem, size = 0x400, scoped, tag = 'input window, operand 0, single buffered']
    #allocation5 [shape = 's32[1]{0}', space=sflag, size = 0x4, scoped, tag = 'scoped memory for tpu_custom_call.1']
    #allocation6 [shape = 's32[1]{0}', space=sflag, size = 0x4, scoped, tag = 'scoped memory for tpu_custom_call.1']
    #allocation7 [shape = 'u8[1024]{0}', space=vmem, size = 0x400, scoped, tag = 'input window, operand 1, single buffered']
    #allocation8 [shape = 's32[1]{0}', space=sflag, size = 0x4, scoped, tag = 'scoped memory for tpu_custom_call.1']
    #allocation9 [shape = 'u8[1024]{0}', space=vmem, size = 0x400, scoped, tag = 'input window, operand 2, single buffered']
    #allocation10 [shape = 'u8[512]{0}', space=vmem, size = 0x400, scoped, tag = 'output window, operand 0, single buffered']
    #allocation11 [shape = 'u8[512]{0}', space=vmem, size = 0x400, scoped, tag = 'output window, operand 1, single buffered']
    #allocation12 [shape = 's32[1]{0}', space=sflag, size = 0x4, scoped, tag = 'scoped memory for tpu_custom_call.1']
    %10 = vsyncpa [#allocation5], 0
    %11 = vsyncpa [#allocation8], 0
    %12 = vsyncpa [#allocation6], 0
    %13 = vsyncpa [#allocation12], 0
    // Predicated region
    $region2: #{tpu_custom_call.1} parent=1 // pred_check
      _
    $region3: #{tpu_custom_call.1} parent=1 // pred_check_branch
      %15 = sbr.rel (0) target = $region5
    $region4: #{tpu_custom_call.1} parent=1 // pred_region
      %s16 = sadd.s32 0, 0
      %18 = vsyncadd [#allocation5], 0
      %s19 = smul.addr %s16, 2
      %s20 = scalar_lea.hbm %s0, %s19
      %s22 = sshll.u32 %s20, 4
      %s23 = int_to_ptr.hbm [resolvable:$true] %s22
      %s24 = sshll.u32 [#allocation4], 4
      %s25 = int_to_ptr.vmem [resolvable:$true] %s24
      %27 = dma.hbm_to_vmem [thread:$0]  %s23, 32, %s25, [#allocation5]
    $region5: #{tpu_custom_call.1} parent=1 // pred_fallthru
      _
    // Predicated region
    $region6: #{tpu_custom_call.1} parent=1 // pred_check
      _
    $region7: #{tpu_custom_call.1} parent=1 // pred_check_branch
      %29 = sbr.rel (0) target = $region9
    $region8: #{tpu_custom_call.1} parent=1 // pred_region
      %s30 = sadd.s32 0, 0
      %32 = vsyncadd [#allocation8], 0
      %s33 = smul.addr %s30, 2
      %s34 = scalar_lea.hbm %s1, %s33
      %s36 = sshll.u32 %s34, 4
      %s37 = int_to_ptr.hbm [resolvable:$true] %s36
      %s38 = sshll.u32 [#allocation7], 4
      %s39 = int_to_ptr.vmem [resolvable:$true] %s38
      %41 = dma.hbm_to_vmem [thread:$0]  %s37, 32, %s39, [#allocation8]
    $region9: #{tpu_custom_call.1} parent=1 // pred_fallthru
      _
    // Predicated region
    $region10: #{tpu_custom_call.1} parent=1 // pred_check
      _
    $region11: #{tpu_custom_call.1} parent=1 // pred_check_branch
      %43 = sbr.rel (0) target = $region13
    $region12: #{tpu_custom_call.1} parent=1 // pred_region
      %s44 = sadd.s32 0, 0
      %46 = vsyncadd [#allocation8], 0
      %s47 = smul.addr %s44, 2
      %s48 = scalar_lea.hbm %s2, %s47
      %s50 = sshll.u32 %s48, 4
      %s51 = int_to_ptr.hbm [resolvable:$true] %s50
      %s52 = sshll.u32 [#allocation9], 4
      %s53 = int_to_ptr.vmem [resolvable:$true] %s52
      %55 = dma.hbm_to_vmem [thread:$0]  %s51, 32, %s53, [#allocation8]
    $region13: #{tpu_custom_call.1} parent=1 // pred_fallthru
      _
    // Predicated region
    $region14: #{tpu_custom_call.1} parent=1 // pred_check
      _
    $region15: #{tpu_custom_call.1} parent=1 // pred_check_branch
      %57 = sbr.rel (0) target = $region17
    $region16: #{tpu_custom_call.1} parent=1 // pred_region
      %59 = dma.done [#allocation5], 32
    $region17: #{tpu_custom_call.1} parent=1 // pred_fallthru
      _
    // Predicated region
    $region18: #{tpu_custom_call.1} parent=1 // pred_check
      _
    $region19: #{tpu_custom_call.1} parent=1 // pred_check_branch
      %61 = sbr.rel (0) target = $region21
    $region20: #{tpu_custom_call.1} parent=1 // pred_region
      %63 = dma.done [#allocation8], 32
    $region21: #{tpu_custom_call.1} parent=1 // pred_fallthru
      _
    // Predicated region
    $region22: #{tpu_custom_call.1} parent=1 // pred_check
      _
    $region23: #{tpu_custom_call.1} parent=1 // pred_check_branch
      %65 = sbr.rel (0) target = $region25
    $region24: #{tpu_custom_call.1} parent=1 // pred_region
      %67 = dma.done [#allocation8], 32
    $region25: #{tpu_custom_call.1} parent=1 // pred_fallthru
      _
    %s68 = sadd.s32 0, 0
    %s69 = sadd.s32 0, 0
    %s70 = sadd.s32 0, 0
    %p71 = scmp.eq.s32.totalorder 0, 0
    // Predicated region
    $region26: #{tpu_custom_call.1} parent=1 // pred_check
      %p72 = pneg %p71
    $region27: #{tpu_custom_call.1} parent=1 // pred_check_branch
      %74 = sbr.rel (%p72) target = $region29
    $region28: #{tpu_custom_call.1} parent=1 // pred_region
      %vm75 = vcmask 0
      %76 = vst.msk [vmem:[#allocation2] sm:$0x1] %vm75, 0.0
      %77 = vst.msk [vmem:[#allocation3] sm:$0x1] %vm75, 0.0
    $region29: #{tpu_custom_call.1} parent=1 // pred_fallthru
      _
    %v78 = vld [vmem:[#allocation4] sm:$0x3]
    %v79 = vld [vmem:[#allocation9] sm:$0x3]
    %v80 = vld [vmem:[#allocation7] sm:$0x3]
    %vm81 = vcmp.gt.s32.totalorder %v80, 0
    %v82 = vsel %vm81, 1, 0
    %v83 = vcvt.s32.f32 %v82
    %vm84 = vcmask 1047616
    %85 = vrot.lane.b32.xlu0 %v83, 8
    %v86 = vpop.permute.xlu0 %85
    %v87 = vsel %vm84, %v86, %v83
    %88 = vrot.lane.b32.xlu0 %v87, 8
    %v89 = vpop.permute.xlu0 %88
    %v90 = vsel %vm84, %v89, %v83
    %v91 = vlaneseq
    %v92 = vand.u32 %v91, 127
    %vm93 = vcmp.eq.s32.totalorder %v92, 0
    %95 = vrot.lane.b32.xlu0 %v90, 121
    %v96 = vpop.permute.xlu0 %95
    %v98 = vsel %vm93, 1.0, %v96
    %v99 = vsub.f32 0.0, %v78
    %v100 = vmul.f32 %v99, %v79
    %v101 = vmul.f32 %v100, %v98
    %v102 = vld [vmem:[#allocation2] sm:$0x1]
    %vm103 = vcmask 58368
    %v104 = vsel %vm103, %v101, 0.0
    %105 = vadd.xlane.f32.xlu0 %v104
    %v106 = vpop.xlane.xlu0 %105
    %v107 = vrot.slane %v106, 4
    %v108 = vadd.f32 %v106, %v107
    %v109 = vrot.slane %v108, 2
    %v110 = vadd.f32 %v108, %v109
    %v111 = vrot.slane %v110, 1
    %v112 = vadd.f32 %v110, %v111
    %s113 = vtos %v112
    %v114 = vstv %s113
    %v115 = vadd.f32 %v102, %v114
    %vm116 = vcmask 0
    %117 = vst.msk [vmem:[#allocation2] sm:$0x1] %vm116, %v115
    %v118 = vld [vmem:[#allocation3] sm:$0x1]
    %v119 = vsel %vm103, %v98, 0.0
    %120 = vadd.xlane.f32.xlu0 %v119
    %v121 = vpop.xlane.xlu0 %120
    %v122 = vrot.slane %v121, 4
    %v123 = vadd.f32 %v121, %v122
    %v124 = vrot.slane %v123, 2
    %v125 = vadd.f32 %v123, %v124
    %v126 = vrot.slane %v125, 1
    %v127 = vadd.f32 %v125, %v126
    %s128 = vtos %v127
    %v129 = vstv %s128
    %v130 = vadd.f32 %v118, %v129
    %131 = vst.msk [vmem:[#allocation3] sm:$0x1] %vm116, %v130
    // Predicated region
    $region30: #{tpu_custom_call.1} parent=1 // pred_check
      %p132 = pneg %p71
    $region31: #{tpu_custom_call.1} parent=1 // pred_check_branch
      %134 = sbr.rel (%p132) target = $region33
    $region32: #{tpu_custom_call.1} parent=1 // pred_region
      %v135 = vld [vmem:[#allocation2] sm:$0x1]
      %v136 = vadd.f32 %v135, 0.0
      %s137 = vtos %v136
      %v138 = vstv %s137
      %139 = vst.msk [vmem:[#allocation10] sm:$0x1] %vm116, %v138
      %v140 = vld [vmem:[#allocation3] sm:$0x1]
      %v141 = vadd.f32 %v140, 0.0
      %s142 = vtos %v141
      %v143 = vstv %s142
      %144 = vst.msk [vmem:[#allocation11] sm:$0x1] %vm116, %v143
    $region33: #{tpu_custom_call.1} parent=1 // pred_fallthru
      _
    // Predicated region
    $region34: #{tpu_custom_call.1} parent=1 // pred_check
      _
    $region35: #{tpu_custom_call.1} parent=1 // pred_check_branch
      %146 = sbr.rel (0) target = $region37
    $region36: #{tpu_custom_call.1} parent=1 // pred_region
      %148 = vsyncadd [#allocation6], 0
      %s150 = sshll.u32 [#allocation10], 4
      %s151 = int_to_ptr.vmem [resolvable:$true] %s150
      %s152 = sshll.u32 %s3, 4
      %s153 = int_to_ptr.hbm [resolvable:$true] %s152
      %155 = dma.vmem_to_hbm [thread:$0]  %s151, 16, %s153, [#allocation6]
    $region37: #{tpu_custom_call.1} parent=1 // pred_fallthru
      _
    // Predicated region
    $region38: #{tpu_custom_call.1} parent=1 // pred_check
      _
    $region39: #{tpu_custom_call.1} parent=1 // pred_check_branch
      %157 = sbr.rel (0) target = $region41
    $region40: #{tpu_custom_call.1} parent=1 // pred_region
      %159 = vsyncadd [#allocation12], 0
      %s161 = sshll.u32 [#allocation11], 4
      %s162 = int_to_ptr.vmem [resolvable:$true] %s161
      %s163 = sshll.u32 %s4, 4
      %s164 = int_to_ptr.hbm [resolvable:$true] %s163
      %166 = dma.vmem_to_hbm [thread:$0]  %s162, 16, %s164, [#allocation12]
    $region41: #{tpu_custom_call.1} parent=1 // pred_fallthru
      _
    // Predicated region
    $region42: #{tpu_custom_call.1} parent=1 // pred_check
      _
    $region43: #{tpu_custom_call.1} parent=1 // pred_check_branch
      %168 = sbr.rel (0) target = $region45
    $region44: #{tpu_custom_call.1} parent=1 // pred_region
      %170 = dma.done [#allocation6], 16
    $region45: #{tpu_custom_call.1} parent=1 // pred_fallthru
      _
    // Predicated region
    $region46: #{tpu_custom_call.1} parent=1 // pred_check
      _
    $region47: #{tpu_custom_call.1} parent=1 // pred_check_branch
      %172 = sbr.rel (0) target = $region49
    $region48: #{tpu_custom_call.1} parent=1 // pred_region
      %174 = dma.done [#allocation12], 16
    $region49: #{tpu_custom_call.1} parent=1 // pred_fallthru
      _
    %175 = vsyncpa [#allocation5], 1
    %176 = vsyncpa [#allocation8], 1
    %177 = vsyncpa [#allocation6], 1
    %178 = vsyncpa [#allocation12], 1

</llo_original>
